<compile_context>
chip_gen: v6e
topology: v6e:2x2x1
jax: 0.10.0
libtpu: 0.0.40
codegen_flags: <defaults>
</compile_context>

<pallas_src>
import functools

import jax
import jax.numpy as jnp
from jax import lax
from jax.experimental import pallas as pl
from jax.experimental.pallas import tpu as pltpu


def _round_up(x, m):
    return (x + m - 1) // m * m


def autoencoder_kernel(x_ref, wenc_ref, benc_ref, wcat_ref, bcat_ref,
                       fused_ref, *, ncls, hid_p, ncls_p, din_p):
    # ---- encode: bf16 MXU matmul, f32 accumulate, f32 tanh -----------------
    h = jnp.tanh(
        jnp.dot(x_ref[...], wenc_ref[...], preferred_element_type=jnp.float32)
        + benc_ref[...])                                       # (TB, hid_p) f32

    # ---- fused head: [classifier | decoder] in one lane-dense MXU pass -----
    y = jnp.dot(h.astype(jnp.bfloat16), wcat_ref[...],
                preferred_element_type=jnp.float32) + bcat_ref[...]
    logits = y[:, :ncls_p]                                     # (TB, ncls_p)
    dec = jnp.tanh(y[:, ncls_p:])                              # (TB, din_p)

    # ---- masked softmax over the real classes (padded lanes are ignored) ---
    col = lax.broadcasted_iota(jnp.int32, logits.shape, 1)
    valid = col < ncls
    lm = jnp.where(valid, logits, -jnp.inf)
    m = jnp.max(lm, axis=-1, keepdims=True)
    e = jnp.where(valid, jnp.exp(lm - m), 0.0)
    sm = e * pl.reciprocal(jnp.sum(e, axis=-1, keepdims=True), approx=True)

    # ---- single fused, 128-lane-aligned output slab: [enc|logits|dec|out] --
    fused_ref[:, 0:hid_p] = h
    fused_ref[:, hid_p:hid_p + ncls_p] = logits
    fused_ref[:, hid_p + ncls_p:hid_p + ncls_p + din_p] = dec
    fused_ref[:, hid_p + ncls_p + din_p:] = sm


def autoencoder_forward(x, params):
    """x: [B, C, H, W] float32 (NCHW).  Returns (encoded, logits, decoded, out)."""
    wenc, benc, wlog, blog, wdec, bdec = params
    B, C, H, W = x.shape
    din = C * H * W
    hid = wenc.shape[1]
    ncls = wlog.shape[1]

    LANE, SUB = 128, 8
    din_p = _round_up(din, LANE)
    hid_p = _round_up(hid, LANE)
    ncls_p = _round_up(ncls, LANE)

    # batch tile: biggest (8-multiple) tile that divides the padded batch,
    # capped at 256 rows to keep activation tiles comfortably inside VMEM.
    b_p = _round_up(B, SUB)
    if b_p >= 256:
        tb = 256
    elif b_p >= 128:
        tb = 128
    else:
        tb = b_p
    b_p = _round_up(b_p, tb)

    f32, bf16 = jnp.float32, jnp.bfloat16

    # fused output layout: [enc | logits | dec | out]
    off_log = hid_p
    off_dec = hid_p + ncls_p
    off_out = hid_p + ncls_p + din_p
    w_tot = hid_p + ncls_p + din_p + ncls_p

    # ---- plain-JAX glue: flatten + zero-pad + fuse head weights ------------
    x_flat = jnp.zeros((b_p, din_p), f32).at[:B, :din].set(x.reshape(B, din))
    wenc_p = jnp.zeros((din_p, hid_p), f32).at[:din, :hid].set(wenc)
    benc_p = jnp.zeros((1, hid_p), f32).at[:, :hid].set(benc.reshape(1, hid))

    wcat = jnp.zeros((hid_p, ncls_p + din_p), f32)
    wcat = wcat.at[:hid, :ncls].set(wlog).at[:hid, ncls_p:ncls_p + din].set(wdec)
    bcat = jnp.zeros((1, ncls_p + din_p), f32)
    bcat = (bcat.at[:, :ncls].set(blog.reshape(1, ncls))
                .at[:, ncls_p:ncls_p + din].set(bdec.reshape(1, din)))

    # bf16 MXU operands (biases stay f32; accumulation is f32 in-kernel)
    x_bf = x_flat.astype(bf16)
    wenc_bf = wenc_p.astype(bf16)
    wcat_bf = wcat.astype(bf16)

    grid = (b_p // tb,)

    in_specs = [
        pl.BlockSpec((tb, din_p), lambda i: (i, 0)),              # x tile
        pl.BlockSpec((din_p, hid_p), lambda i: (0, 0)),           # wenc (resident)
        pl.BlockSpec((1, hid_p), lambda i: (0, 0)),               # benc (resident)
        pl.BlockSpec((hid_p, ncls_p + din_p), lambda i: (0, 0)),  # fused head W
        pl.BlockSpec((1, ncls_p + din_p), lambda i: (0, 0)),      # fused head b
    ]
    out_specs = pl.BlockSpec((tb, w_tot), lambda i: (i, 0))
    out_shape = jax.ShapeDtypeStruct((b_p, w_tot), f32)

    # VMEM budget: double-buffered activation / output tiles + resident
    # weights, clamped so it is safe on v7x (64 MiB physical) and v5e/v6e.
    def _bytes(shape, dt):
        n = 1
        for s in shape:
            n *= s
        return n * jnp.dtype(dt).itemsize

    est = (2 * _bytes((tb, din_p), bf16)                      # x tiles
           + 2 * (_bytes((din_p, hid_p), bf16)                # weights / biases
                  + _bytes((1, hid_p), f32)
                  + _bytes((hid_p, ncls_p + din_p), bf16)
                  + _bytes((1, ncls_p + din_p), f32))
           + 2 * _bytes((tb, w_tot), f32))                    # fused output tiles
    vmem_limit = int(min(max(2 * est, 32 * 1024 * 1024), 56 * 1024 * 1024))

    kernel = functools.partial(autoencoder_kernel, ncls=ncls,
                               hid_p=hid_p, ncls_p=ncls_p, din_p=din_p)
    fused = pl.pallas_call(
        kernel,
        out_shape=out_shape,
        grid=grid,
        in_specs=in_specs,
        out_specs=out_specs,
        compiler_params=pltpu.CompilerParams(
            dimension_semantics=("parallel",),
            vmem_limit_bytes=vmem_limit),
    )(x_bf, wenc_bf, benc_p, wcat_bf, bcat)

    encoded = fused[:B, :hid]
    logits = fused[:B, off_log:off_log + ncls]
    decoded = fused[:B, off_dec:off_dec + din].reshape(x.shape)  # decoded.view_as(x)
    out = fused[:B, off_out:off_out + ncls]
    return encoded, logits, decoded, out


def init_params(key, din, hid, ncls):
    k1, k2, k3 = jax.random.split(key, 3)
    scale_e = 1.0 / jnp.sqrt(din)
    scale_l = 1.0 / jnp.sqrt(hid)
    wenc = jax.random.uniform(k1, (din, hid), jnp.float32, -scale_e, scale_e)
    benc = jnp.zeros((1, hid), jnp.float32)
    wlog = jax.random.uniform(k2, (hid, ncls), jnp.float32, -scale_l, scale_l)
    blog = jnp.zeros((1, ncls), jnp.float32)
    wdec = jax.random.uniform(k3, (hid, din), jnp.float32, -scale_l, scale_l)
    bdec = jnp.zeros((1, din), jnp.float32)
    return (wenc, benc, wlog, blog, wdec, bdec)


if __name__ == "__main__":
    key = jax.random.PRNGKey(0)
    kx, kp = jax.random.split(key)

    B, C, H, W = 2, 4, 16, 16
    din = C * H * W
    hid = 32
    ncls = 10

    x = jax.random.normal(kx, (B, C, H, W), jnp.float32)
    params = init_params(kp, din, hid, ncls)

    encoded, logits, decoded, out = autoencoder_forward(x, params)
    jax.block_until_ready((encoded, logits, decoded, out))

    assert encoded.shape == (B, hid)
    assert logits.shape == (B, ncls)
    assert decoded.shape == x.shape
    assert out.shape == (B, ncls)

    # correctness check against plain-JAX f32 reference (loose tolerances:
    # kernel runs the matmuls in bf16 and uses the approximate EUP reciprocal)
    wenc, benc, wlog, blog, wdec, bdec = params
    xf = x.reshape(B, din)
    h_ref = jnp.tanh(xf @ wenc + benc)
    lg_ref = h_ref @ wlog + blog
    out_ref = jax.nn.softmax(lg_ref, axis=-1)
    dec_ref = jnp.tanh(h_ref @ wdec + bdec).reshape(x.shape)
    assert jnp.allclose(encoded, h_ref, atol=5e-2, rtol=5e-2)
    assert jnp.allclose(logits, lg_ref, atol=5e-2, rtol=5e-2)
    assert jnp.allclose(decoded, dec_ref, atol=5e-2, rtol=5e-2)
    assert jnp.allclose(out, out_ref, atol=5e-2, rtol=5e-2)

    print("KERNEL_OK")
</pallas_src>

<mosaic_0001>
module attributes {stable_mosaic.version = 11 : i64} {
  func.func @autoencoder_kernel(%arg0: i32, %arg1: memref<8x1024xbf16, #tpu.memory_space<vmem>>, %arg2: memref<1024x128xbf16, #tpu.memory_space<vmem>>, %arg3: memref<1x128xf32, #tpu.memory_space<vmem>>, %arg4: memref<128x1152xbf16, #tpu.memory_space<vmem>>, %arg5: memref<1x1152xf32, #tpu.memory_space<vmem>>, %arg6: memref<8x1408xf32, #tpu.memory_space<vmem>>) attributes {dimension_semantics = [#tpu.dimension_semantics<parallel>], iteration_bounds = array<i64: 1>, scalar_prefetch = 0 : i64, scratch_operands = 0 : i64, tpu.core_type = #tpu.core_type<tc>, window_params = [{transform_indices = @transform_0, window_bounds = array<i64: 8, 1024>}, {pipeline_mode = #tpu.pipeline_mode<synchronous>, transform_indices = @transform_1, window_bounds = array<i64: 1024, 128>}, {pipeline_mode = #tpu.pipeline_mode<synchronous>, transform_indices = @transform_2, window_bounds = array<i64: 1, 128>}, {pipeline_mode = #tpu.pipeline_mode<synchronous>, transform_indices = @transform_3, window_bounds = array<i64: 128, 1152>}, {pipeline_mode = #tpu.pipeline_mode<synchronous>, transform_indices = @transform_4, window_bounds = array<i64: 1, 1152>}, {transform_indices = @transform_5, window_bounds = array<i64: 8, 1408>}]} {
    %c0 = arith.constant 0 : index
    %c0_0 = arith.constant 0 : index
    %0 = vector.load %arg1[%c0, %c0_0] : memref<8x1024xbf16, #tpu.memory_space<vmem>>, vector<8x1024xbf16>
    %c0_1 = arith.constant 0 : index
    %c0_2 = arith.constant 0 : index
    %1 = vector.load %arg2[%c0_1, %c0_2] : memref<1024x128xbf16, #tpu.memory_space<vmem>>, vector<1024x128xbf16>
    %cst = arith.constant dense<0.000000e+00> : vector<8x128xf32>
    %2 = tpu.matmul %0, %1, %cst {dimension_numbers = #tpu.dot_dimension_numbers<[1], [0], [0], [1], [0, 0, 1, 1], [], []>} : vector<8x1024xbf16>, vector<1024x128xbf16>, vector<8x128xf32> -> vector<8x128xf32>
    %c0_3 = arith.constant 0 : index
    %c0_4 = arith.constant 0 : index
    %3 = vector.load %arg3[%c0_3, %c0_4] : memref<1x128xf32, #tpu.memory_space<vmem>>, vector<1x128xf32>
    %4 = vector.broadcast %3 : vector<1x128xf32> to vector<8x128xf32>
    %5 = arith.addf %2, %4 : vector<8x128xf32>
    %6 = math.tanh %5 : vector<8x128xf32>
    %7 = arith.truncf %6 : vector<8x128xf32> to vector<8x128xbf16>
    %c0_5 = arith.constant 0 : index
    %c0_6 = arith.constant 0 : index
    %8 = vector.load %arg4[%c0_5, %c0_6] : memref<128x1152xbf16, #tpu.memory_space<vmem>>, vector<128x1152xbf16>
    %cst_7 = arith.constant dense<0.000000e+00> : vector<8x1152xf32>
    %9 = tpu.matmul %7, %8, %cst_7 {dimension_numbers = #tpu.dot_dimension_numbers<[1], [0], [0], [1], [0, 0, 1, 1], [], []>} : vector<8x128xbf16>, vector<128x1152xbf16>, vector<8x1152xf32> -> vector<8x1152xf32>
    %c0_8 = arith.constant 0 : index
    %c0_9 = arith.constant 0 : index
    %10 = vector.load %arg5[%c0_8, %c0_9] : memref<1x1152xf32, #tpu.memory_space<vmem>>, vector<1x1152xf32>
    %11 = vector.broadcast %10 : vector<1x1152xf32> to vector<8x1152xf32>
    %12 = arith.addf %9, %11 : vector<8x1152xf32>
    %13 = vector.extract_strided_slice %12 {offsets = [0, 0], sizes = [8, 128], strides = [1, 1]} : vector<8x1152xf32> to vector<8x128xf32>
    %14 = vector.extract_strided_slice %12 {offsets = [0, 128], sizes = [8, 1024], strides = [1, 1]} : vector<8x1152xf32> to vector<8x1024xf32>
    %15 = math.tanh %14 : vector<8x1024xf32>
    %16 = tpu.iota {dimensions = array<i32: 1>} : vector<8x128xi32>
    %c10_i32 = arith.constant 10 : i32
    %17 = vector.broadcast %c10_i32 : i32 to vector<8x128xi32>
    %18 = arith.cmpi slt, %16, %17 : vector<8x128xi32>
    %cst_10 = arith.constant 0xFF800000 : f32
    %19 = vector.broadcast %cst_10 : f32 to vector<8x128xf32>
    %20 = arith.select %18, %13, %19 : vector<8x128xi1>, vector<8x128xf32>
    %cst_11 = arith.constant dense<0xFF800000> : vector<8xf32>
    %21 = vector.multi_reduction <maximumf>, %20, %cst_11 [1] : vector<8x128xf32> to vector<8xf32>
    %22 = vector.shape_cast %21 : vector<8xf32> to vector<8x1xf32>
    %23 = vector.broadcast %22 : vector<8x1xf32> to vector<8x128xf32>
    %24 = arith.subf %20, %23 : vector<8x128xf32>
    %25 = math.exp %24 : vector<8x128xf32>
    %cst_12 = arith.constant 0.000000e+00 : f32
    %26 = vector.broadcast %cst_12 : f32 to vector<8x128xf32>
    %27 = arith.select %18, %25, %26 : vector<8x128xi1>, vector<8x128xf32>
    %cst_13 = arith.constant dense<0.000000e+00> : vector<8xf32>
    %28 = vector.multi_reduction <add>, %27, %cst_13 [1] : vector<8x128xf32> to vector<8xf32>
    %29 = vector.shape_cast %28 : vector<8xf32> to vector<8x1xf32>
    %30 = tpu.reciprocal %29 {approx = true} : vector<8x1xf32> -> vector<8x1xf32>
    %31 = vector.broadcast %30 : vector<8x1xf32> to vector<8x128xf32>
    %32 = arith.mulf %27, %31 : vector<8x128xf32>
    %c0_14 = arith.constant 0 : index
    %c0_15 = arith.constant 0 : index
    %33 = vector.load %arg6[%c0_14, %c0_15] : memref<8x1408xf32, #tpu.memory_space<vmem>>, vector<8x128xf32>
    tpu.vector_store %arg6[%c0_14, %c0_15], %6 {strides = array<i32>} : memref<8x1408xf32, #tpu.memory_space<vmem>>, vector<8x128xf32>,
    %c0_16 = arith.constant 0 : index
    %c128 = arith.constant 128 : index
    %34 = vector.load %arg6[%c0_16, %c128] : memref<8x1408xf32, #tpu.memory_space<vmem>>, vector<8x128xf32>
    tpu.vector_store %arg6[%c0_16, %c128], %13 {strides = array<i32>} : memref<8x1408xf32, #tpu.memory_space<vmem>>, vector<8x128xf32>,
    %c0_17 = arith.constant 0 : index
    %c256 = arith.constant 256 : index
    %35 = vector.load %arg6[%c0_17, %c256] : memref<8x1408xf32, #tpu.memory_space<vmem>>, vector<8x1024xf32>
    tpu.vector_store %arg6[%c0_17, %c256], %15 {strides = array<i32>} : memref<8x1408xf32, #tpu.memory_space<vmem>>, vector<8x1024xf32>,
    %c0_18 = arith.constant 0 : index
    %c1280 = arith.constant 1280 : index
    %36 = vector.load %arg6[%c0_18, %c1280] : memref<8x1408xf32, #tpu.memory_space<vmem>>, vector<8x128xf32>
    tpu.vector_store %arg6[%c0_18, %c1280], %32 {strides = array<i32>} : memref<8x1408xf32, #tpu.memory_space<vmem>>, vector<8x128xf32>,
    return
  }
  func.func @transform_0(%arg0: i32) -> (i32, i32) {
    %c0_i32 = arith.constant 0 : i32
    %c0_i32_0 = arith.constant 0 : i32
    return %arg0, %c0_i32 : i32, i32
  }
  func.func @transform_1(%arg0: i32) -> (i32, i32) {
    %c0_i32 = arith.constant 0 : i32
    %c0_i32_0 = arith.constant 0 : i32
    %c0_i32_1 = arith.constant 0 : i32
    return %c0_i32, %c0_i32_0 : i32, i32
  }
  func.func @transform_2(%arg0: i32) -> (i32, i32) {
    %c0_i32 = arith.constant 0 : i32
    %c0_i32_0 = arith.constant 0 : i32
    %c0_i32_1 = arith.constant 0 : i32
    return %c0_i32, %c0_i32_0 : i32, i32
  }
  func.func @transform_3(%arg0: i32) -> (i32, i32) {
    %c0_i32 = arith.constant 0 : i32
    %c0_i32_0 = arith.constant 0 : i32
    %c0_i32_1 = arith.constant 0 : i32
    return %c0_i32, %c0_i32_0 : i32, i32
  }
  func.func @transform_4(%arg0: i32) -> (i32, i32) {
    %c0_i32 = arith.constant 0 : i32
    %c0_i32_0 = arith.constant 0 : i32
    %c0_i32_1 = arith.constant 0 : i32
    return %c0_i32, %c0_i32_0 : i32, i32
  }
  func.func @transform_5(%arg0: i32) -> (i32, i32) {
    %c0_i32 = arith.constant 0 : i32
    %c0_i32_0 = arith.constant 0 : i32
    return %arg0, %c0_i32 : i32, i32
  }
}

</mosaic_0001>

<llo_original>
// kernel: tpu_custom_call.1
$region0: #{tpu_custom_call.1}
  #allocation0 [shape = 'u32[]', space=smem, size = 0x4, offset = 0x4, fixed_abs, tag = 'smem constant byte address 0x4 - core index']
  #allocation1 [shape = 'u32[144,128]{1,0:T(1,128)}', space=vmem, size = 0x12000, scoped, tag = 'internal scratch']
  %s0 = inlined_call_operand.hbm [shape: bf16[8,1024], index: 0, kind: input, shape index: {}]
  %s1 = inlined_call_operand.hbm [shape: bf16[1024,128], index: 1, kind: input, shape index: {}]
  %s2 = inlined_call_operand.vmem [shape: f32[1,128], index: 2, kind: input, shape index: {}]
  %s3 = inlined_call_operand.hbm [shape: bf16[128,1152], index: 3, kind: input, shape index: {}]
  %s4 = inlined_call_operand.hbm [shape: f32[1,1152], index: 4, kind: input, shape index: {}]
  %s5 = inlined_call_operand.hbm [shape: f32[8,1408], index: 5, kind: output, shape index: {}]
  %s6 = sld [smem:[#allocation0]]
  $region46: #{tpu_custom_call.1} parent=0
    _
  %s8 = ssub.s32 1, %s6
  %s9 = scalar_select 0, %s8, %s6
  $region1: #{tpu_custom_call.1} parent=0
    #allocation2 [shape = 'u8[16384]{0}', space=vmem, size = 0x4000, scoped, tag = 'input window, operand 0, single buffered']
    #allocation3 [shape = 's32[1]{0}', space=sflag, size = 0x4, scoped, tag = 'scoped memory for tpu_custom_call.1']
    #allocation4 [shape = 's32[1]{0}', space=sflag, size = 0x4, scoped, tag = 'scoped memory for tpu_custom_call.1']
    #allocation5 [shape = 'u8[262144]{0}', space=vmem, size = 0x40000, scoped, tag = 'input window, operand 1, single buffered']
    #allocation6 [shape = 's32[1]{0}', space=sflag, size = 0x4, scoped, tag = 'scoped memory for tpu_custom_call.1']
    #allocation7 [shape = 'u8[294912]{0}', space=vmem, size = 0x48000, scoped, tag = 'input window, operand 3, single buffered']
    #allocation8 [shape = 'u8[4608]{0}', space=vmem, size = 0x1400, scoped, tag = 'input window, operand 4, single buffered']
    #allocation9 [shape = 's32[1]{0}', space=sflag, size = 0x4, scoped, tag = 'scoped memory for tpu_custom_call.1']
    #allocation10 [shape = 'u8[45056]{0}', space=vmem, size = 0xb000, scoped, tag = 'output window, operand 0, single buffered']
    %10 = vsyncpa [#allocation3], 0
    %11 = vsyncpa [#allocation6], 0
    %12 = vsyncpa [#allocation9], 0
    %13 = vsyncpa [#allocation4], 0
    // Predicated region
    $region2: #{tpu_custom_call.1} parent=1 // pred_check
      _
    $region3: #{tpu_custom_call.1} parent=1 // pred_check_branch
      %15 = sbr.rel (0) target = $region5
    $region4: #{tpu_custom_call.1} parent=1 // pred_region
      %s17 = ssub.s32 512, 512
      %18 = vsyncadd [#allocation3], %s17
      %s20 = sshll.u32 [#allocation2], 4
      %s21 = int_to_ptr.vmem [resolvable:$true] %s20
      %23 = dma.hbm_to_vmem [thread:$0]  %s0, 512, %s21, [#allocation3]
    $region5: #{tpu_custom_call.1} parent=1 // pred_fallthru
      _
    // Predicated region
    $region6: #{tpu_custom_call.1} parent=1 // pred_check
      _
    $region7: #{tpu_custom_call.1} parent=1 // pred_check_branch
      %25 = sbr.rel (0) target = $region9
    $region8: #{tpu_custom_call.1} parent=1 // pred_region
      %s27 = ssub.s32 8192, 8192
      %28 = vsyncadd [#allocation6], %s27
      %s29 = sshll.u32 [#allocation5], 4
      %s30 = int_to_ptr.vmem [resolvable:$true] %s29
      %35 = dma.hbm_to_vmem [thread:$0]  %s1, 8192, %s30, [#allocation6], 64, 64, 4
    $region9: #{tpu_custom_call.1} parent=1 // pred_fallthru
      _
    // Predicated region
    $region10: #{tpu_custom_call.1} parent=1 // pred_check
      _
    $region11: #{tpu_custom_call.1} parent=1 // pred_check_branch
      %37 = sbr.rel (0) target = $region13
    $region12: #{tpu_custom_call.1} parent=1 // pred_region
      _
    $region13: #{tpu_custom_call.1} parent=1 // pred_fallthru
      _
    // Predicated region
    $region14: #{tpu_custom_call.1} parent=1 // pred_check
      _
    $region15: #{tpu_custom_call.1} parent=1 // pred_check_branch
      %39 = sbr.rel (0) target = $region17
    $region16: #{tpu_custom_call.1} parent=1 // pred_region
      %s41 = ssub.s32 9216, 9216
      %42 = vsyncadd [#allocation6], %s41
      %s43 = sshll.u32 [#allocation7], 4
      %s44 = int_to_ptr.vmem [resolvable:$true] %s43
      %49 = dma.hbm_to_vmem [thread:$0]  %s3, 9216, %s44, [#allocation6], 576, 576, 36
    $region17: #{tpu_custom_call.1} parent=1 // pred_fallthru
      _
    // Predicated region
    $region18: #{tpu_custom_call.1} parent=1 // pred_check
      _
    $region19: #{tpu_custom_call.1} parent=1 // pred_check_branch
      %51 = sbr.rel (0) target = $region21
    $region20: #{tpu_custom_call.1} parent=1 // pred_region
      %s53 = ssub.s32 144, 144
      %54 = vsyncadd [#allocation9], %s53
      %s56 = sshll.u32 [#allocation8], 4
      %s57 = int_to_ptr.vmem [resolvable:$true] %s56
      %59 = dma.hbm_to_vmem [thread:$0]  %s4, 144, %s57, [#allocation9]
    $region21: #{tpu_custom_call.1} parent=1 // pred_fallthru
      _
    // Predicated region
    $region22: #{tpu_custom_call.1} parent=1 // pred_check
      _
    $region23: #{tpu_custom_call.1} parent=1 // pred_check_branch
      %61 = sbr.rel (0) target = $region25
    $region24: #{tpu_custom_call.1} parent=1 // pred_region
      %62 = dma.done [#allocation3], 512
    $region25: #{tpu_custom_call.1} parent=1 // pred_fallthru
      _
    // Predicated region
    $region26: #{tpu_custom_call.1} parent=1 // pred_check
      _
    $region27: #{tpu_custom_call.1} parent=1 // pred_check_branch
      %64 = sbr.rel (0) target = $region29
    $region28: #{tpu_custom_call.1} parent=1 // pred_region
      %65 = dma.done [#allocation6], 8192
    $region29: #{tpu_custom_call.1} parent=1 // pred_fallthru
      _
    // Predicated region
    $region30: #{tpu_custom_call.1} parent=1 // pred_check
      _
    $region31: #{tpu_custom_call.1} parent=1 // pred_check_branch
      %67 = sbr.rel (0) target = $region33
    $region32: #{tpu_custom_call.1} parent=1 // pred_region
      %68 = dma.done [#allocation6], 9216
    $region33: #{tpu_custom_call.1} parent=1 // pred_fallthru
      _
    // Predicated region
    $region34: #{tpu_custom_call.1} parent=1 // pred_check
      _
    $region35: #{tpu_custom_call.1} parent=1 // pred_check_branch
      %70 = sbr.rel (0) target = $region37
    $region36: #{tpu_custom_call.1} parent=1 // pred_region
      %71 = dma.done [#allocation9], 144
    $region37: #{tpu_custom_call.1} parent=1 // pred_fallthru
      _
    %v73 = vld [vmem:[#allocation2] sm:$0xff]
    %v74 = vld [vmem:[#allocation2 + $0x8] sm:$0xff]
    %v75 = vld [vmem:[#allocation2 + $0x10] sm:$0xff]
    %v76 = vld [vmem:[#allocation2 + $0x18] sm:$0xff]
    %v77 = vld [vmem:[#allocation5] sm:$0xf]
    %v78 = vld [vmem:[#allocation5 + $0x4] sm:$0xf]
    %v79 = vld [vmem:[#allocation5 + $0x8] sm:$0xf]
    %v80 = vld [vmem:[#allocation5 + $0xc] sm:$0xf]
    %v81 = vld [vmem:[#allocation5 + $0x10] sm:$0xf]
    %v82 = vld [vmem:[#allocation5 + $0x14] sm:$0xf]
    %v83 = vld [vmem:[#allocation5 + $0x18] sm:$0xf]
    %v84 = vld [vmem:[#allocation5 + $0x1c] sm:$0xf]
    %v85 = vld [vmem:[#allocation5 + $0x20] sm:$0xf]
    %v86 = vld [vmem:[#allocation5 + $0x24] sm:$0xf]
    %v87 = vld [vmem:[#allocation5 + $0x28] sm:$0xf]
    %v88 = vld [vmem:[#allocation5 + $0x2c] sm:$0xf]
    %v89 = vld [vmem:[#allocation5 + $0x30] sm:$0xf]
    %v90 = vld [vmem:[#allocation5 + $0x34] sm:$0xf]
    %v91 = vld [vmem:[#allocation5 + $0x38] sm:$0xf]
    %v92 = vld [vmem:[#allocation5 + $0x3c] sm:$0xf]
    %v93 = vld [vmem:[#allocation5 + $0x40] sm:$0xf]
    %v94 = vld [vmem:[#allocation5 + $0x44] sm:$0xf]
    %v95 = vld [vmem:[#allocation5 + $0x48] sm:$0xf]
    %v96 = vld [vmem:[#allocation5 + $0x4c] sm:$0xf]
    %v97 = vld [vmem:[#allocation5 + $0x50] sm:$0xf]
    %v98 = vld [vmem:[#allocation5 + $0x54] sm:$0xf]
    %v99 = vld [vmem:[#allocation5 + $0x58] sm:$0xf]
    %v100 = vld [vmem:[#allocation5 + $0x5c] sm:$0xf]
    %v101 = vld [vmem:[#allocation5 + $0x60] sm:$0xf]
    %v102 = vld [vmem:[#allocation5 + $0x64] sm:$0xf]
    %v103 = vld [vmem:[#allocation5 + $0x68] sm:$0xf]
    %v104 = vld [vmem:[#allocation5 + $0x6c] sm:$0xf]
    %v105 = vld [vmem:[#allocation5 + $0x70] sm:$0xf]
    %v106 = vld [vmem:[#allocation5 + $0x74] sm:$0xf]
    %v107 = vld [vmem:[#allocation5 + $0x78] sm:$0xf]
    %v108 = vld [vmem:[#allocation5 + $0x7c] sm:$0xf]
    %v109 = vld [vmem:[#allocation5 + $0x80] sm:$0xf]
    %v110 = vld [vmem:[#allocation5 + $0x84] sm:$0xf]
    %v111 = vld [vmem:[#allocation5 + $0x88] sm:$0xf]
    %v112 = vld [vmem:[#allocation5 + $0x8c] sm:$0xf]
    %v113 = vld [vmem:[#allocation5 + $0x90] sm:$0xf]
    %v114 = vld [vmem:[#allocation5 + $0x94] sm:$0xf]
    %v115 = vld [vmem:[#allocation5 + $0x98] sm:$0xf]
    %v116 = vld [vmem:[#allocation5 + $0x9c] sm:$0xf]
    %v117 = vld [vmem:[#allocation5 + $0xa0] sm:$0xf]
    %v118 = vld [vmem:[#allocation5 + $0xa4] sm:$0xf]
    %v119 = vld [vmem:[#allocation5 + $0xa8] sm:$0xf]
    %v120 = vld [vmem:[#allocation5 + $0xac] sm:$0xf]
    %v121 = vld [vmem:[#allocation5 + $0xb0] sm:$0xf]
    %v122 = vld [vmem:[#allocation5 + $0xb4] sm:$0xf]
    %v123 = vld [vmem:[#allocation5 + $0xb8] sm:$0xf]
    %v124 = vld [vmem:[#allocation5 + $0xbc] sm:$0xf]
    %v125 = vld [vmem:[#allocation5 + $0xc0] sm:$0xf]
    %v126 = vld [vmem:[#allocation5 + $0xc4] sm:$0xf]
    %v127 = vld [vmem:[#allocation5 + $0xc8] sm:$0xf]
    %v128 = vld [vmem:[#allocation5 + $0xcc] sm:$0xf]
    %v129 = vld [vmem:[#allocation5 + $0xd0] sm:$0xf]
    %v130 = vld [vmem:[#allocation5 + $0xd4] sm:$0xf]
    %v131 = vld [vmem:[#allocation5 + $0xd8] sm:$0xf]
    %v132 = vld [vmem:[#allocation5 + $0xdc] sm:$0xf]
    %v133 = vld [vmem:[#allocation5 + $0xe0] sm:$0xf]
    %v134 = vld [vmem:[#allocation5 + $0xe4] sm:$0xf]
    %v135 = vld [vmem:[#allocation5 + $0xe8] sm:$0xf]
    %v136 = vld [vmem:[#allocation5 + $0xec] sm:$0xf]
    %v137 = vld [vmem:[#allocation5 + $0xf0] sm:$0xf]
    %v138 = vld [vmem:[#allocation5 + $0xf4] sm:$0xf]
    %v139 = vld [vmem:[#allocation5 + $0xf8] sm:$0xf]
    %v140 = vld [vmem:[#allocation5 + $0xfc] sm:$0xf]
    %v141 = vld [vmem:[#allocation5 + $0x100] sm:$0xf]
    %v142 = vld [vmem:[#allocation5 + $0x104] sm:$0xf]
    %v143 = vld [vmem:[#allocation5 + $0x108] sm:$0xf]
    %v144 = vld [vmem:[#allocation5 + $0x10c] sm:$0xf]
    %v145 = vld [vmem:[#allocation5 + $0x110] sm:$0xf]
    %v146 = vld [vmem:[#allocation5 + $0x114] sm:$0xf]
    %v147 = vld [vmem:[#allocation5 + $0x118] sm:$0xf]
    %v148 = vld [vmem:[#allocation5 + $0x11c] sm:$0xf]
    %v149 = vld [vmem:[#allocation5 + $0x120] sm:$0xf]
    %v150 = vld [vmem:[#allocation5 + $0x124] sm:$0xf]
    %v151 = vld [vmem:[#allocation5 + $0x128] sm:$0xf]
    %v152 = vld [vmem:[#allocation5 + $0x12c] sm:$0xf]
    %v153 = vld [vmem:[#allocation5 + $0x130] sm:$0xf]
    %v154 = vld [vmem:[#allocation5 + $0x134] sm:$0xf]
    %v155 = vld [vmem:[#allocation5 + $0x138] sm:$0xf]
    %v156 = vld [vmem:[#allocation5 + $0x13c] sm:$0xf]
    %v157 = vld [vmem:[#allocation5 + $0x140] sm:$0xf]
    %v158 = vld [vmem:[#allocation5 + $0x144] sm:$0xf]
    %v159 = vld [vmem:[#allocation5 + $0x148] sm:$0xf]
    %v160 = vld [vmem:[#allocation5 + $0x14c] sm:$0xf]
    %v161 = vld [vmem:[#allocation5 + $0x150] sm:$0xf]
    %v162 = vld [vmem:[#allocation5 + $0x154] sm:$0xf]
    %v163 = vld [vmem:[#allocation5 + $0x158] sm:$0xf]
    %v164 = vld [vmem:[#allocation5 + $0x15c] sm:$0xf]
    %v165 = vld [vmem:[#allocation5 + $0x160] sm:$0xf]
    %v166 = vld [vmem:[#allocation5 + $0x164] sm:$0xf]
    %v167 = vld [vmem:[#allocation5 + $0x168] sm:$0xf]
    %v168 = vld [vmem:[#allocation5 + $0x16c] sm:$0xf]
    %v169 = vld [vmem:[#allocation5 + $0x170] sm:$0xf]
    %v170 = vld [vmem:[#allocation5 + $0x174] sm:$0xf]
    %v171 = vld [vmem:[#allocation5 + $0x178] sm:$0xf]
    %v172 = vld [vmem:[#allocation5 + $0x17c] sm:$0xf]
    %v173 = vld [vmem:[#allocation5 + $0x180] sm:$0xf]
    %v174 = vld [vmem:[#allocation5 + $0x184] sm:$0xf]
    %v175 = vld [vmem:[#allocation5 + $0x188] sm:$0xf]
    %v176 = vld [vmem:[#allocation5 + $0x18c] sm:$0xf]
    %v177 = vld [vmem:[#allocation5 + $0x190] sm:$0xf]
    %v178 = vld [vmem:[#allocation5 + $0x194] sm:$0xf]
    %v179 = vld [vmem:[#allocation5 + $0x198] sm:$0xf]
    %v180 = vld [vmem:[#allocation5 + $0x19c] sm:$0xf]
    %v181 = vld [vmem:[#allocation5 + $0x1a0] sm:$0xf]
    %v182 = vld [vmem:[#allocation5 + $0x1a4] sm:$0xf]
    %v183 = vld [vmem:[#allocation5 + $0x1a8] sm:$0xf]
    %v184 = vld [vmem:[#allocation5 + $0x1ac] sm:$0xf]
    %v185 = vld [vmem:[#allocation5 + $0x1b0] sm:$0xf]
    %v186 = vld [vmem:[#allocation5 + $0x1b4] sm:$0xf]
    %v187 = vld [vmem:[#allocation5 + $0x1b8] sm:$0xf]
    %v188 = vld [vmem:[#allocation5 + $0x1bc] sm:$0xf]
    %v189 = vld [vmem:[#allocation5 + $0x1c0] sm:$0xf]
    %v190 = vld [vmem:[#allocation5 + $0x1c4] sm:$0xf]
    %v191 = vld [vmem:[#allocation5 + $0x1c8] sm:$0xf]
    %v192 = vld [vmem:[#allocation5 + $0x1cc] sm:$0xf]
    %v193 = vld [vmem:[#allocation5 + $0x1d0] sm:$0xf]
    %v194 = vld [vmem:[#allocation5 + $0x1d4] sm:$0xf]
    %v195 = vld [vmem:[#allocation5 + $0x1d8] sm:$0xf]
    %v196 = vld [vmem:[#allocation5 + $0x1dc] sm:$0xf]
    %v197 = vld [vmem:[#allocation5 + $0x1e0] sm:$0xf]
    %v198 = vld [vmem:[#allocation5 + $0x1e4] sm:$0xf]
    %v199 = vld [vmem:[#allocation5 + $0x1e8] sm:$0xf]
    %v200 = vld [vmem:[#allocation5 + $0x1ec] sm:$0xf]
    %v201 = vld [vmem:[#allocation5 + $0x1f0] sm:$0xf]
    %v202 = vld [vmem:[#allocation5 + $0x1f4] sm:$0xf]
    %v203 = vld [vmem:[#allocation5 + $0x1f8] sm:$0xf]
    %v204 = vld [vmem:[#allocation5 + $0x1fc] sm:$0xf]
    %v205 = vld [vmem:[%s2] sm:$0x1]
    %v207 = vlaneseq
    %v208 = vshrl.u32 %v207, 7
    %v209 = vsub.s32 0, %v208
    %v210 = vrot.slane %v205, %v209
    %v216 = vunpack.c.l.b16 %v73
    %v217 = vunpack.c.h.b16 %v73
    %v218 = vunpack.c.l.b16 %v74
    %v219 = vunpack.c.h.b16 %v74
    %v220 = vunpack.c.l.b16 %v75
    %v221 = vunpack.c.h.b16 %v75
    %v222 = vunpack.c.l.b16 %v76
    %v223 = vunpack.c.h.b16 %v76
    %v224 = vpack.c.b16 %v216, %v216
    %v225 = vpack.c.b16 %v217, %v217
    %v226 = vpack.c.b16 %v218, %v218
    %v227 = vpack.c.b16 %v219, %v219
    %v228 = vpack.c.b16 %v220, %v220
    %v229 = vpack.c.b16 %v221, %v221
    %v230 = vpack.c.b16 %v222, %v222
    %v231 = vpack.c.b16 %v223, %v223
    %v368 = vunpack.c.l.b16 %v77
    %v369 = vunpack.c.l.b16 %v78
    %v370 = vunpack.c.l.b16 %v79
    %v371 = vunpack.c.l.b16 %v80
    %v372 = vunpack.c.l.b16 %v81
    %v373 = vunpack.c.l.b16 %v82
    %v374 = vunpack.c.l.b16 %v83
    %v375 = vunpack.c.l.b16 %v84
    %v376 = vunpack.c.l.b16 %v85
    %v377 = vunpack.c.l.b16 %v86
    %v378 = vunpack.c.l.b16 %v87
    %v379 = vunpack.c.l.b16 %v88
    %v380 = vunpack.c.l.b16 %v89
    %v381 = vunpack.c.l.b16 %v90
    %v382 = vunpack.c.l.b16 %v91
    %v383 = vunpack.c.l.b16 %v92
    %v384 = vunpack.c.l.b16 %v93
    %v385 = vunpack.c.l.b16 %v94
    %v386 = vunpack.c.l.b16 %v95
    %v387 = vunpack.c.l.b16 %v96
    %v388 = vunpack.c.l.b16 %v97
    %v389 = vunpack.c.l.b16 %v98
    %v390 = vunpack.c.l.b16 %v99
    %v391 = vunpack.c.l.b16 %v100
    %v392 = vunpack.c.l.b16 %v101
    %v393 = vunpack.c.l.b16 %v102
    %v394 = vunpack.c.l.b16 %v103
    %v395 = vunpack.c.l.b16 %v104
    %v396 = vunpack.c.l.b16 %v105
    %v397 = vunpack.c.l.b16 %v106
    %v398 = vunpack.c.l.b16 %v107
    %v399 = vunpack.c.l.b16 %v108
    %v400 = vunpack.c.l.b16 %v109
    %v401 = vunpack.c.l.b16 %v110
    %v402 = vunpack.c.l.b16 %v111
    %v403 = vunpack.c.l.b16 %v112
    %v404 = vunpack.c.l.b16 %v113
    %v405 = vunpack.c.l.b16 %v114
    %v406 = vunpack.c.l.b16 %v115
    %v407 = vunpack.c.l.b16 %v116
    %v408 = vunpack.c.l.b16 %v117
    %v409 = vunpack.c.l.b16 %v118
    %v410 = vunpack.c.l.b16 %v119
    %v411 = vunpack.c.l.b16 %v120
    %v412 = vunpack.c.l.b16 %v121
    %v413 = vunpack.c.l.b16 %v122
    %v414 = vunpack.c.l.b16 %v123
    %v415 = vunpack.c.l.b16 %v124
    %v416 = vunpack.c.l.b16 %v125
    %v417 = vunpack.c.l.b16 %v126
    %v418 = vunpack.c.l.b16 %v127
    %v419 = vunpack.c.l.b16 %v128
    %v420 = vunpack.c.l.b16 %v129
    %v421 = vunpack.c.l.b16 %v130
    %v422 = vunpack.c.l.b16 %v131
    %v423 = vunpack.c.l.b16 %v132
    %v424 = vunpack.c.l.b16 %v133
    %v425 = vunpack.c.l.b16 %v134
    %v426 = vunpack.c.l.b16 %v135
    %v427 = vunpack.c.l.b16 %v136
    %v428 = vunpack.c.l.b16 %v137
    %v429 = vunpack.c.l.b16 %v138
    %v430 = vunpack.c.l.b16 %v139
    %v431 = vunpack.c.l.b16 %v140
    %v432 = vunpack.c.l.b16 %v141
    %v433 = vunpack.c.l.b16 %v142
    %v434 = vunpack.c.l.b16 %v143
    %v435 = vunpack.c.l.b16 %v144
    %v436 = vunpack.c.l.b16 %v145
    %v437 = vunpack.c.l.b16 %v146
    %v438 = vunpack.c.l.b16 %v147
    %v439 = vunpack.c.l.b16 %v148
    %v440 = vunpack.c.l.b16 %v149
    %v441 = vunpack.c.l.b16 %v150
    %v442 = vunpack.c.l.b16 %v151
    %v443 = vunpack.c.l.b16 %v152
    %v444 = vunpack.c.l.b16 %v153
    %v445 = vunpack.c.l.b16 %v154
    %v446 = vunpack.c.l.b16 %v155
    %v447 = vunpack.c.l.b16 %v156
    %v448 = vunpack.c.l.b16 %v157
    %v449 = vunpack.c.l.b16 %v158
    %v450 = vunpack.c.l.b16 %v159
    %v451 = vunpack.c.l.b16 %v160
    %v452 = vunpack.c.l.b16 %v161
    %v453 = vunpack.c.l.b16 %v162
    %v454 = vunpack.c.l.b16 %v163
    %v455 = vunpack.c.l.b16 %v164
    %v456 = vunpack.c.l.b16 %v165
    %v457 = vunpack.c.l.b16 %v166
    %v458 = vunpack.c.l.b16 %v167
    %v459 = vunpack.c.l.b16 %v168
    %v460 = vunpack.c.l.b16 %v169
    %v461 = vunpack.c.l.b16 %v170
    %v462 = vunpack.c.l.b16 %v171
    %v463 = vunpack.c.l.b16 %v172
    %v464 = vunpack.c.l.b16 %v173
    %v465 = vunpack.c.l.b16 %v174
    %v466 = vunpack.c.l.b16 %v175
    %v467 = vunpack.c.l.b16 %v176
    %v468 = vunpack.c.l.b16 %v177
    %v469 = vunpack.c.l.b16 %v178
    %v470 = vunpack.c.l.b16 %v179
    %v471 = vunpack.c.l.b16 %v180
    %v472 = vunpack.c.l.b16 %v181
    %v473 = vunpack.c.l.b16 %v182
    %v474 = vunpack.c.l.b16 %v183
    %v475 = vunpack.c.l.b16 %v184
    %v476 = vunpack.c.l.b16 %v185
    %v477 = vunpack.c.l.b16 %v186
    %v478 = vunpack.c.l.b16 %v187
    %v479 = vunpack.c.l.b16 %v188
    %v480 = vunpack.c.l.b16 %v189
    %v481 = vunpack.c.l.b16 %v190
    %v482 = vunpack.c.l.b16 %v191
    %v483 = vunpack.c.l.b16 %v192
    %v484 = vunpack.c.l.b16 %v193
    %v485 = vunpack.c.l.b16 %v194
    %v486 = vunpack.c.l.b16 %v195
    %v487 = vunpack.c.l.b16 %v196
    %v488 = vunpack.c.l.b16 %v197
    %v489 = vunpack.c.l.b16 %v198
    %v490 = vunpack.c.l.b16 %v199
    %v491 = vunpack.c.l.b16 %v200
    %v492 = vunpack.c.l.b16 %v201
    %v493 = vunpack.c.l.b16 %v202
    %v494 = vunpack.c.l.b16 %v203
    %v495 = vunpack.c.l.b16 %v204
    %v496 = vpack.c.b16 %v369, %v368
    %v497 = vpack.c.b16 %v371, %v370
    %v498 = vpack.c.b16 %v373, %v372
    %v499 = vpack.c.b16 %v375, %v374
    %v500 = vpack.c.b16 %v377, %v376
    %v501 = vpack.c.b16 %v379, %v378
    %v502 = vpack.c.b16 %v381, %v380
    %v503 = vpack.c.b16 %v383, %v382
    %v504 = vpack.c.b16 %v385, %v384
    %v505 = vpack.c.b16 %v387, %v386
    %v506 = vpack.c.b16 %v389, %v388
    %v507 = vpack.c.b16 %v391, %v390
    %v508 = vpack.c.b16 %v393, %v392
    %v509 = vpack.c.b16 %v395, %v394
    %v510 = vpack.c.b16 %v397, %v396
    %v511 = vpack.c.b16 %v399, %v398
    %v512 = vpack.c.b16 %v401, %v400
    %v513 = vpack.c.b16 %v403, %v402
    %v514 = vpack.c.b16 %v405, %v404
    %v515 = vpack.c.b16 %v407, %v406
    %v516 = vpack.c.b16 %v409, %v408
    %v517 = vpack.c.b16 %v411, %v410
    %v518 = vpack.c.b16 %v413, %v412
    %v519 = vpack.c.b16 %v415, %v414
    %v520 = vpack.c.b16 %v417, %v416
    %v521 = vpack.c.b16 %v419, %v418
    %v522 = vpack.c.b16 %v421, %v420
    %v523 = vpack.c.b16 %v423, %v422
    %v524 = vpack.c.b16 %v425, %v424
    %v525 = vpack.c.b16 %v427, %v426
    %v526 = vpack.c.b16 %v429, %v428
    %v527 = vpack.c.b16 %v431, %v430
    %v528 = vpack.c.b16 %v433, %v432
    %v529 = vpack.c.b16 %v435, %v434
    %v530 = vpack.c.b16 %v437, %v436
    %v531 = vpack.c.b16 %v439, %v438
    %v532 = vpack.c.b16 %v441, %v440
    %v533 = vpack.c.b16 %v443, %v442
    %v534 = vpack.c.b16 %v445, %v444
    %v535 = vpack.c.b16 %v447, %v446
    %v536 = vpack.c.b16 %v449, %v448
    %v537 = vpack.c.b16 %v451, %v450
    %v538 = vpack.c.b16 %v453, %v452
    %v539 = vpack.c.b16 %v455, %v454
    %v540 = vpack.c.b16 %v457, %v456
    %v541 = vpack.c.b16 %v459, %v458
    %v542 = vpack.c.b16 %v461, %v460
    %v543 = vpack.c.b16 %v463, %v462
    %v544 = vpack.c.b16 %v465, %v464
    %v545 = vpack.c.b16 %v467, %v466
    %v546 = vpack.c.b16 %v469, %v468
    %v547 = vpack.c.b16 %v471, %v470
    %v548 = vpack.c.b16 %v473, %v472
    %v549 = vpack.c.b16 %v475, %v474
    %v550 = vpack.c.b16 %v477, %v476
    %v551 = vpack.c.b16 %v479, %v478
    %v552 = vpack.c.b16 %v481, %v480
    %v553 = vpack.c.b16 %v483, %v482
    %v554 = vpack.c.b16 %v485, %v484
    %v555 = vpack.c.b16 %v487, %v486
    %v556 = vpack.c.b16 %v489, %v488
    %v557 = vpack.c.b16 %v491, %v490
    %v558 = vpack.c.b16 %v493, %v492
    %v559 = vpack.c.b16 %v495, %v494
    %624 = vmatprep.subr.bf16.mxu0 0
    %625 = vmatpush1.bf16.msra.mxu0 %v503
    %626 = vmatprep.subr.bf16.mxu0 0
    %627 = vmatpush1.bf16.msra.mxu0 %v502
    %628 = vmatprep.subr.bf16.mxu0 0
    %629 = vmatpush1.bf16.msra.mxu0 %v501
    %630 = vmatprep.subr.bf16.mxu0 0
    %631 = vmatpush1.bf16.msra.mxu0 %v500
    %632 = vmatprep.subr.bf16.mxu0 0
    %633 = vmatpush1.bf16.msra.mxu0 %v499
    %634 = vmatprep.subr.bf16.mxu0 0
    %635 = vmatpush1.bf16.msra.mxu0 %v498
    %636 = vmatprep.subr.bf16.mxu0 0
    %637 = vmatpush1.bf16.msra.mxu0 %v497
    %638 = vmatprep.subr.bf16.mxu0 0
    %639 = vmatpush1.bf16.msra.mxu0 %v496
    %640 = vmatprep.subr.bf16.mxu0 0
    %641 = vmatpush2.bf16.msra.mxu0 %v511
    %642 = vmatprep.subr.bf16.mxu0 0
    %643 = vmatpush2.bf16.msra.mxu0 %v510
    %644 = vmatprep.subr.bf16.mxu0 0
    %645 = vmatpush2.bf16.msra.mxu0 %v509
    %646 = vmatprep.subr.bf16.mxu0 0
    %647 = vmatpush2.bf16.msra.mxu0 %v508
    %648 = vmatprep.subr.bf16.mxu0 0
    %649 = vmatpush2.bf16.msra.mxu0 %v507
    %650 = vmatprep.subr.bf16.mxu0 0
    %651 = vmatpush2.bf16.msra.mxu0 %v506
    %652 = vmatprep.subr.bf16.mxu0 0
    %653 = vmatpush2.bf16.msra.mxu0 %v505
    %654 = vmatprep.subr.bf16.mxu0 0
    %655 = vmatpush2.bf16.msra.mxu0 %v504
    %656 = vmatprep.mubr.bf16.mxu0 %v225
    %657 = vmatmul.mubr.bf16.gmra.mxu0 %v224
    %v658 = vpop.f32.mrf.mxu0
    %v659 = vadd.f32 %v210, %v658
    %v660 = vpop.f32.mrf.mxu0
    %v661 = vpop.f32.mrf.mxu0
    %v662 = vpop.f32.mrf.mxu0
    %663 = vdwg.mxu0
    %664 = vmatprep.subr.bf16.mxu0 0
    %665 = vmatpush1.bf16.msra.mxu0 %v519
    %666 = vmatprep.subr.bf16.mxu0 0
    %667 = vmatpush1.bf16.msra.mxu0 %v518
    %668 = vmatprep.subr.bf16.mxu0 0
    %669 = vmatpush1.bf16.msra.mxu0 %v517
    %670 = vmatprep.subr.bf16.mxu0 0
    %671 = vmatpush1.bf16.msra.mxu0 %v516
    %672 = vmatprep.subr.bf16.mxu0 0
    %673 = vmatpush1.bf16.msra.mxu0 %v515
    %674 = vmatprep.subr.bf16.mxu0 0
    %675 = vmatpush1.bf16.msra.mxu0 %v514
    %676 = vmatprep.subr.bf16.mxu0 0
    %677 = vmatpush1.bf16.msra.mxu0 %v513
    %678 = vmatprep.subr.bf16.mxu0 0
    %679 = vmatpush1.bf16.msra.mxu0 %v512
    %680 = vmatprep.subr.bf16.mxu0 0
    %681 = vmatpush2.bf16.msra.mxu0 %v527
    %682 = vmatprep.subr.bf16.mxu0 0
    %683 = vmatpush2.bf16.msra.mxu0 %v526
    %684 = vmatprep.subr.bf16.mxu0 0
    %685 = vmatpush2.bf16.msra.mxu0 %v525
    %686 = vmatprep.subr.bf16.mxu0 0
    %687 = vmatpush2.bf16.msra.mxu0 %v524
    %688 = vmatprep.subr.bf16.mxu0 0
    %689 = vmatpush2.bf16.msra.mxu0 %v523
    %690 = vmatprep.subr.bf16.mxu0 0
    %691 = vmatpush2.bf16.msra.mxu0 %v522
    %692 = vmatprep.subr.bf16.mxu0 0
    %693 = vmatpush2.bf16.msra.mxu0 %v521
    %694 = vmatprep.subr.bf16.mxu0 0
    %695 = vmatpush2.bf16.msra.mxu0 %v520
    %696 = vmatprep.mubr.bf16.mxu0 %v227
    %697 = vmatmul.mubr.bf16.gmra.mxu0 %v226
    %v698 = vpop.f32.mrf.mxu0
    %v699 = vadd.f32 %v659, %v698
    %v700 = vpop.f32.mrf.mxu0
    %v701 = vpop.f32.mrf.mxu0
    %v702 = vpop.f32.mrf.mxu0
    %703 = vdwg.mxu0
    %704 = vmatprep.subr.bf16.mxu0 0
    %705 = vmatpush1.bf16.msra.mxu0 %v535
    %706 = vmatprep.subr.bf16.mxu0 0
    %707 = vmatpush1.bf16.msra.mxu0 %v534
    %708 = vmatprep.subr.bf16.mxu0 0
    %709 = vmatpush1.bf16.msra.mxu0 %v533
    %710 = vmatprep.subr.bf16.mxu0 0
    %711 = vmatpush1.bf16.msra.mxu0 %v532
    %712 = vmatprep.subr.bf16.mxu0 0
    %713 = vmatpush1.bf16.msra.mxu0 %v531
    %714 = vmatprep.subr.bf16.mxu0 0
    %715 = vmatpush1.bf16.msra.mxu0 %v530
    %716 = vmatprep.subr.bf16.mxu0 0
    %717 = vmatpush1.bf16.msra.mxu0 %v529
    %718 = vmatprep.subr.bf16.mxu0 0
    %719 = vmatpush1.bf16.msra.mxu0 %v528
    %720 = vmatprep.subr.bf16.mxu0 0
    %721 = vmatpush2.bf16.msra.mxu0 %v543
    %722 = vmatprep.subr.bf16.mxu0 0
    %723 = vmatpush2.bf16.msra.mxu0 %v542
    %724 = vmatprep.subr.bf16.mxu0 0
    %725 = vmatpush2.bf16.msra.mxu0 %v541
    %726 = vmatprep.subr.bf16.mxu0 0
    %727 = vmatpush2.bf16.msra.mxu0 %v540
    %728 = vmatprep.subr.bf16.mxu0 0
    %729 = vmatpush2.bf16.msra.mxu0 %v539
    %730 = vmatprep.subr.bf16.mxu0 0
    %731 = vmatpush2.bf16.msra.mxu0 %v538
    %732 = vmatprep.subr.bf16.mxu0 0
    %733 = vmatpush2.bf16.msra.mxu0 %v537
    %734 = vmatprep.subr.bf16.mxu0 0
    %735 = vmatpush2.bf16.msra.mxu0 %v536
    %736 = vmatprep.mubr.bf16.mxu0 %v229
    %737 = vmatmul.mubr.bf16.gmra.mxu0 %v228
    %v738 = vpop.f32.mrf.mxu0
    %v739 = vadd.f32 %v699, %v738
    %v740 = vpop.f32.mrf.mxu0
    %v741 = vpop.f32.mrf.mxu0
    %v742 = vpop.f32.mrf.mxu0
    %743 = vdwg.mxu0
    %744 = vmatprep.subr.bf16.mxu0 0
    %745 = vmatpush1.bf16.msra.mxu0 %v551
    %746 = vmatprep.subr.bf16.mxu0 0
    %747 = vmatpush1.bf16.msra.mxu0 %v550
    %748 = vmatprep.subr.bf16.mxu0 0
    %749 = vmatpush1.bf16.msra.mxu0 %v549
    %750 = vmatprep.subr.bf16.mxu0 0
    %751 = vmatpush1.bf16.msra.mxu0 %v548
    %752 = vmatprep.subr.bf16.mxu0 0
    %753 = vmatpush1.bf16.msra.mxu0 %v547
    %754 = vmatprep.subr.bf16.mxu0 0
    %755 = vmatpush1.bf16.msra.mxu0 %v546
    %756 = vmatprep.subr.bf16.mxu0 0
    %757 = vmatpush1.bf16.msra.mxu0 %v545
    %758 = vmatprep.subr.bf16.mxu0 0
    %759 = vmatpush1.bf16.msra.mxu0 %v544
    %760 = vmatprep.subr.bf16.mxu0 0
    %761 = vmatpush2.bf16.msra.mxu0 %v559
    %762 = vmatprep.subr.bf16.mxu0 0
    %763 = vmatpush2.bf16.msra.mxu0 %v558
    %764 = vmatprep.subr.bf16.mxu0 0
    %765 = vmatpush2.bf16.msra.mxu0 %v557
    %766 = vmatprep.subr.bf16.mxu0 0
    %767 = vmatpush2.bf16.msra.mxu0 %v556
    %768 = vmatprep.subr.bf16.mxu0 0
    %769 = vmatpush2.bf16.msra.mxu0 %v555
    %770 = vmatprep.subr.bf16.mxu0 0
    %771 = vmatpush2.bf16.msra.mxu0 %v554
    %772 = vmatprep.subr.bf16.mxu0 0
    %773 = vmatpush2.bf16.msra.mxu0 %v553
    %774 = vmatprep.subr.bf16.mxu0 0
    %775 = vmatpush2.bf16.msra.mxu0 %v552
    %776 = vmatprep.mubr.bf16.mxu0 %v231
    %777 = vmatmul.mubr.bf16.gmra.mxu0 %v230
    %v778 = vpop.f32.mrf.mxu0
    %v779 = vadd.f32 %v739, %v778
    %v780 = vpop.f32.mrf.mxu0
    %v781 = vpop.f32.mrf.mxu0
    %v782 = vpop.f32.mrf.mxu0
    %783 = vdwg.mxu0
    %v784 = vtanh.pop %v779
    %v785 = vpack.c.bf16 %v784, %v784
    %v786 = vld [vmem:[#allocation7] sm:$0xff]
    %v787 = vld [vmem:[#allocation7 + $0x8] sm:$0xff]
    %v788 = vld [vmem:[#allocation7 + $0x10] sm:$0xff]
    %v789 = vld [vmem:[#allocation7 + $0x18] sm:$0xff]
    %v790 = vld [vmem:[#allocation7 + $0x20] sm:$0xf]
    %v791 = vld [vmem:[#allocation7 + $0x24] sm:$0xff]
    %v792 = vld [vmem:[#allocation7 + $0x2c] sm:$0xff]
    %v793 = vld [vmem:[#allocation7 + $0x34] sm:$0xff]
    %v794 = vld [vmem:[#allocation7 + $0x3c] sm:$0xff]
    %v795 = vld [vmem:[#allocation7 + $0x44] sm:$0xf]
    %v796 = vld [vmem:[#allocation7 + $0x48] sm:$0xff]
    %v797 = vld [vmem:[#allocation7 + $0x50] sm:$0xff]
    %v798 = vld [vmem:[#allocation7 + $0x58] sm:$0xff]
    %v799 = vld [vmem:[#allocation7 + $0x60] sm:$0xff]
    %v800 = vld [vmem:[#allocation7 + $0x68] sm:$0xf]
    %v801 = vld [vmem:[#allocation7 + $0x6c] sm:$0xff]
    %v802 = vld [vmem:[#allocation7 + $0x74] sm:$0xff]
    %v803 = vld [vmem:[#allocation7 + $0x7c] sm:$0xff]
    %v804 = vld [vmem:[#allocation7 + $0x84] sm:$0xff]
    %v805 = vld [vmem:[#allocation7 + $0x8c] sm:$0xf]
    %v806 = vld [vmem:[#allocation7 + $0x90] sm:$0xff]
    %v807 = vld [vmem:[#allocation7 + $0x98] sm:$0xff]
    %v808 = vld [vmem:[#allocation7 + $0xa0] sm:$0xff]
    %v809 = vld [vmem:[#allocation7 + $0xa8] sm:$0xff]
    %v810 = vld [vmem:[#allocation7 + $0xb0] sm:$0xf]
    %v811 = vld [vmem:[#allocation7 + $0xb4] sm:$0xff]
    %v812 = vld [vmem:[#allocation7 + $0xbc] sm:$0xff]
    %v813 = vld [vmem:[#allocation7 + $0xc4] sm:$0xff]
    %v814 = vld [vmem:[#allocation7 + $0xcc] sm:$0xff]
    %v815 = vld [vmem:[#allocation7 + $0xd4] sm:$0xf]
    %v816 = vld [vmem:[#allocation7 + $0xd8] sm:$0xff]
    %v817 = vld [vmem:[#allocation7 + $0xe0] sm:$0xff]
    %v818 = vld [vmem:[#allocation7 + $0xe8] sm:$0xff]
    %v819 = vld [vmem:[#allocation7 + $0xf0] sm:$0xff]
    %v820 = vld [vmem:[#allocation7 + $0xf8] sm:$0xf]
    %v821 = vld [vmem:[#allocation7 + $0xfc] sm:$0xff]
    %v822 = vld [vmem:[#allocation7 + $0x104] sm:$0xff]
    %v823 = vld [vmem:[#allocation7 + $0x10c] sm:$0xff]
    %v824 = vld [vmem:[#allocation7 + $0x114] sm:$0xff]
    %v825 = vld [vmem:[#allocation7 + $0x11c] sm:$0xf]
    %v826 = vld [vmem:[#allocation7 + $0x120] sm:$0xff]
    %v827 = vld [vmem:[#allocation7 + $0x128] sm:$0xff]
    %v828 = vld [vmem:[#allocation7 + $0x130] sm:$0xff]
    %v829 = vld [vmem:[#allocation7 + $0x138] sm:$0xff]
    %v830 = vld [vmem:[#allocation7 + $0x140] sm:$0xf]
    %v831 = vld [vmem:[#allocation7 + $0x144] sm:$0xff]
    %v832 = vld [vmem:[#allocation7 + $0x14c] sm:$0xff]
    %v833 = vld [vmem:[#allocation7 + $0x154] sm:$0xff]
    %v834 = vld [vmem:[#allocation7 + $0x15c] sm:$0xff]
    %v835 = vld [vmem:[#allocation7 + $0x164] sm:$0xf]
    %v836 = vld [vmem:[#allocation7 + $0x168] sm:$0xff]
    %v837 = vld [vmem:[#allocation7 + $0x170] sm:$0xff]
    %v838 = vld [vmem:[#allocation7 + $0x178] sm:$0xff]
    %v839 = vld [vmem:[#allocation7 + $0x180] sm:$0xff]
    %v840 = vld [vmem:[#allocation7 + $0x188] sm:$0xf]
    %v841 = vld [vmem:[#allocation7 + $0x18c] sm:$0xff]
    %v842 = vld [vmem:[#allocation7 + $0x194] sm:$0xff]
    %v843 = vld [vmem:[#allocation7 + $0x19c] sm:$0xff]
    %v844 = vld [vmem:[#allocation7 + $0x1a4] sm:$0xff]
    %v845 = vld [vmem:[#allocation7 + $0x1ac] sm:$0xf]
    %v846 = vld [vmem:[#allocation7 + $0x1b0] sm:$0xff]
    %v847 = vld [vmem:[#allocation7 + $0x1b8] sm:$0xff]
    %v848 = vld [vmem:[#allocation7 + $0x1c0] sm:$0xff]
    %v849 = vld [vmem:[#allocation7 + $0x1c8] sm:$0xff]
    %v850 = vld [vmem:[#allocation7 + $0x1d0] sm:$0xf]
    %v851 = vld [vmem:[#allocation7 + $0x1d4] sm:$0xff]
    %v852 = vld [vmem:[#allocation7 + $0x1dc] sm:$0xff]
    %v853 = vld [vmem:[#allocation7 + $0x1e4] sm:$0xff]
    %v854 = vld [vmem:[#allocation7 + $0x1ec] sm:$0xff]
    %v855 = vld [vmem:[#allocation7 + $0x1f4] sm:$0xf]
    %v856 = vld [vmem:[#allocation7 + $0x1f8] sm:$0xff]
    %v857 = vld [vmem:[#allocation7 + $0x200] sm:$0xff]
    %v858 = vld [vmem:[#allocation7 + $0x208] sm:$0xff]
    %v859 = vld [vmem:[#allocation7 + $0x210] sm:$0xff]
    %v860 = vld [vmem:[#allocation7 + $0x218] sm:$0xf]
    %v861 = vld [vmem:[#allocation7 + $0x21c] sm:$0xff]
    %v862 = vld [vmem:[#allocation7 + $0x224] sm:$0xff]
    %v863 = vld [vmem:[#allocation7 + $0x22c] sm:$0xff]
    %v864 = vld [vmem:[#allocation7 + $0x234] sm:$0xff]
    %v865 = vld [vmem:[#allocation7 + $0x23c] sm:$0xf]
    %v866 = vld [vmem:[#allocation8] sm:$0xff]
    %v867 = vld [vmem:[#allocation8 + $0x8] sm:$0x1]
    %v870 = vlaneseq
    %v871 = vshrl.u32 %v870, 7
    %v872 = vsub.s32 0, %v871
    %v873 = vrot.slane %v866, %v872
    %v874 = vlaneseq
    %v875 = vshrl.u32 %v874, 7
    %v876 = vsub.s32 1, %v875
    %v877 = vrot.slane %v866, %v876
    %v878 = vlaneseq
    %v879 = vshrl.u32 %v878, 7
    %v880 = vsub.s32 2, %v879
    %v881 = vrot.slane %v866, %v880
    %v882 = vlaneseq
    %v883 = vshrl.u32 %v882, 7
    %v884 = vsub.s32 3, %v883
    %v885 = vrot.slane %v866, %v884
    %v886 = vlaneseq
    %v887 = vshrl.u32 %v886, 7
    %v888 = vsub.s32 4, %v887
    %v889 = vrot.slane %v866, %v888
    %v890 = vlaneseq
    %v891 = vshrl.u32 %v890, 7
    %v892 = vsub.s32 5, %v891
    %v893 = vrot.slane %v866, %v892
    %v894 = vlaneseq
    %v895 = vshrl.u32 %v894, 7
    %v896 = vsub.s32 6, %v895
    %v897 = vrot.slane %v866, %v896
    %v898 = vlaneseq
    %v899 = vshrl.u32 %v898, 7
    %v900 = vsub.s32 7, %v899
    %v901 = vrot.slane %v866, %v900
    %v902 = vlaneseq
    %v903 = vshrl.u32 %v902, 7
    %v904 = vsub.s32 0, %v903
    %v905 = vrot.slane %v867, %v904
    %v995 = vunpack.c.l.b16 %v786
    %v996 = vunpack.c.h.b16 %v786
    %v997 = vunpack.c.l.b16 %v787
    %v998 = vunpack.c.h.b16 %v787
    %v999 = vunpack.c.l.b16 %v788
    %v1000 = vunpack.c.h.b16 %v788
    %v1001 = vunpack.c.l.b16 %v789
    %v1002 = vunpack.c.h.b16 %v789
    %v1003 = vunpack.c.l.b16 %v790
    %v1004 = vunpack.c.l.b16 %v791
    %v1005 = vunpack.c.h.b16 %v791
    %v1006 = vunpack.c.l.b16 %v792
    %v1007 = vunpack.c.h.b16 %v792
    %v1008 = vunpack.c.l.b16 %v793
    %v1009 = vunpack.c.h.b16 %v793
    %v1010 = vunpack.c.l.b16 %v794
    %v1011 = vunpack.c.h.b16 %v794
    %v1012 = vunpack.c.l.b16 %v795
    %v1013 = vunpack.c.l.b16 %v796
    %v1014 = vunpack.c.h.b16 %v796
    %v1015 = vunpack.c.l.b16 %v797
    %v1016 = vunpack.c.h.b16 %v797
    %v1017 = vunpack.c.l.b16 %v798
    %v1018 = vunpack.c.h.b16 %v798
    %v1019 = vunpack.c.l.b16 %v799
    %v1020 = vunpack.c.h.b16 %v799
    %v1021 = vunpack.c.l.b16 %v800
    %v1022 = vunpack.c.l.b16 %v801
    %v1023 = vunpack.c.h.b16 %v801
    %v1024 = vunpack.c.l.b16 %v802
    %v1025 = vunpack.c.h.b16 %v802
    %v1026 = vunpack.c.l.b16 %v803
    %v1027 = vunpack.c.h.b16 %v803
    %v1028 = vunpack.c.l.b16 %v804
    %v1029 = vunpack.c.h.b16 %v804
    %v1030 = vunpack.c.l.b16 %v805
    %v1031 = vunpack.c.l.b16 %v806
    %v1032 = vunpack.c.h.b16 %v806
    %v1033 = vunpack.c.l.b16 %v807
    %v1034 = vunpack.c.h.b16 %v807
    %v1035 = vunpack.c.l.b16 %v808
    %v1036 = vunpack.c.h.b16 %v808
    %v1037 = vunpack.c.l.b16 %v809
    %v1038 = vunpack.c.h.b16 %v809
    %v1039 = vunpack.c.l.b16 %v810
    %v1040 = vunpack.c.l.b16 %v811
    %v1041 = vunpack.c.h.b16 %v811
    %v1042 = vunpack.c.l.b16 %v812
    %v1043 = vunpack.c.h.b16 %v812
    %v1044 = vunpack.c.l.b16 %v813
    %v1045 = vunpack.c.h.b16 %v813
    %v1046 = vunpack.c.l.b16 %v814
    %v1047 = vunpack.c.h.b16 %v814
    %v1048 = vunpack.c.l.b16 %v815
    %v1049 = vunpack.c.l.b16 %v816
    %v1050 = vunpack.c.h.b16 %v816
    %v1051 = vunpack.c.l.b16 %v817
    %v1052 = vunpack.c.h.b16 %v817
    %v1053 = vunpack.c.l.b16 %v818
    %v1054 = vunpack.c.h.b16 %v818
    %v1055 = vunpack.c.l.b16 %v819
    %v1056 = vunpack.c.h.b16 %v819
    %v1057 = vunpack.c.l.b16 %v820
    %v1058 = vunpack.c.l.b16 %v821
    %v1059 = vunpack.c.h.b16 %v821
    %v1060 = vunpack.c.l.b16 %v822
    %v1061 = vunpack.c.h.b16 %v822
    %v1062 = vunpack.c.l.b16 %v823
    %v1063 = vunpack.c.h.b16 %v823
    %v1064 = vunpack.c.l.b16 %v824
    %v1065 = vunpack.c.h.b16 %v824
    %v1066 = vunpack.c.l.b16 %v825
    %v1067 = vunpack.c.l.b16 %v826
    %v1068 = vunpack.c.h.b16 %v826
    %v1069 = vunpack.c.l.b16 %v827
    %v1070 = vunpack.c.h.b16 %v827
    %v1071 = vunpack.c.l.b16 %v828
    %v1072 = vunpack.c.h.b16 %v828
    %v1073 = vunpack.c.l.b16 %v829
    %v1074 = vunpack.c.h.b16 %v829
    %v1075 = vunpack.c.l.b16 %v830
    %v1076 = vunpack.c.l.b16 %v831
    %v1077 = vunpack.c.h.b16 %v831
    %v1078 = vunpack.c.l.b16 %v832
    %v1079 = vunpack.c.h.b16 %v832
    %v1080 = vunpack.c.l.b16 %v833
    %v1081 = vunpack.c.h.b16 %v833
    %v1082 = vunpack.c.l.b16 %v834
    %v1083 = vunpack.c.h.b16 %v834
    %v1084 = vunpack.c.l.b16 %v835
    %v1085 = vunpack.c.l.b16 %v836
    %v1086 = vunpack.c.h.b16 %v836
    %v1087 = vunpack.c.l.b16 %v837
    %v1088 = vunpack.c.h.b16 %v837
    %v1089 = vunpack.c.l.b16 %v838
    %v1090 = vunpack.c.h.b16 %v838
    %v1091 = vunpack.c.l.b16 %v839
    %v1092 = vunpack.c.h.b16 %v839
    %v1093 = vunpack.c.l.b16 %v840
    %v1094 = vunpack.c.l.b16 %v841
    %v1095 = vunpack.c.h.b16 %v841
    %v1096 = vunpack.c.l.b16 %v842
    %v1097 = vunpack.c.h.b16 %v842
    %v1098 = vunpack.c.l.b16 %v843
    %v1099 = vunpack.c.h.b16 %v843
    %v1100 = vunpack.c.l.b16 %v844
    %v1101 = vunpack.c.h.b16 %v844
    %v1102 = vunpack.c.l.b16 %v845
    %v1103 = vunpack.c.l.b16 %v846
    %v1104 = vunpack.c.h.b16 %v846
    %v1105 = vunpack.c.l.b16 %v847
    %v1106 = vunpack.c.h.b16 %v847
    %v1107 = vunpack.c.l.b16 %v848
    %v1108 = vunpack.c.h.b16 %v848
    %v1109 = vunpack.c.l.b16 %v849
    %v1110 = vunpack.c.h.b16 %v849
    %v1111 = vunpack.c.l.b16 %v850
    %v1112 = vunpack.c.l.b16 %v851
    %v1113 = vunpack.c.h.b16 %v851
    %v1114 = vunpack.c.l.b16 %v852
    %v1115 = vunpack.c.h.b16 %v852
    %v1116 = vunpack.c.l.b16 %v853
    %v1117 = vunpack.c.h.b16 %v853
    %v1118 = vunpack.c.l.b16 %v854
    %v1119 = vunpack.c.h.b16 %v854
    %v1120 = vunpack.c.l.b16 %v855
    %v1121 = vunpack.c.l.b16 %v856
    %v1122 = vunpack.c.h.b16 %v856
    %v1123 = vunpack.c.l.b16 %v857
    %v1124 = vunpack.c.h.b16 %v857
    %v1125 = vunpack.c.l.b16 %v858
    %v1126 = vunpack.c.h.b16 %v858
    %v1127 = vunpack.c.l.b16 %v859
    %v1128 = vunpack.c.h.b16 %v859
    %v1129 = vunpack.c.l.b16 %v860
    %v1130 = vunpack.c.l.b16 %v861
    %v1131 = vunpack.c.h.b16 %v861
    %v1132 = vunpack.c.l.b16 %v862
    %v1133 = vunpack.c.h.b16 %v862
    %v1134 = vunpack.c.l.b16 %v863
    %v1135 = vunpack.c.h.b16 %v863
    %v1136 = vunpack.c.l.b16 %v864
    %v1137 = vunpack.c.h.b16 %v864
    %v1138 = vunpack.c.l.b16 %v865
    %v1139 = vpack.c.b16 %v1004, %v995
    %v1140 = vpack.c.b16 %v1005, %v996
    %v1141 = vpack.c.b16 %v1006, %v997
    %v1142 = vpack.c.b16 %v1007, %v998
    %v1143 = vpack.c.b16 %v1008, %v999
    %v1144 = vpack.c.b16 %v1009, %v1000
    %v1145 = vpack.c.b16 %v1010, %v1001
    %v1146 = vpack.c.b16 %v1011, %v1002
    %v1147 = vpack.c.b16 %v1012, %v1003
    %v1148 = vpack.c.b16 %v1022, %v1013
    %v1149 = vpack.c.b16 %v1023, %v1014
    %v1150 = vpack.c.b16 %v1024, %v1015
    %v1151 = vpack.c.b16 %v1025, %v1016
    %v1152 = vpack.c.b16 %v1026, %v1017
    %v1153 = vpack.c.b16 %v1027, %v1018
    %v1154 = vpack.c.b16 %v1028, %v1019
    %v1155 = vpack.c.b16 %v1029, %v1020
    %v1156 = vpack.c.b16 %v1030, %v1021
    %v1157 = vpack.c.b16 %v1040, %v1031
    %v1158 = vpack.c.b16 %v1041, %v1032
    %v1159 = vpack.c.b16 %v1042, %v1033
    %v1160 = vpack.c.b16 %v1043, %v1034
    %v1161 = vpack.c.b16 %v1044, %v1035
    %v1162 = vpack.c.b16 %v1045, %v1036
    %v1163 = vpack.c.b16 %v1046, %v1037
    %v1164 = vpack.c.b16 %v1047, %v1038
    %v1165 = vpack.c.b16 %v1048, %v1039
    %v1166 = vpack.c.b16 %v1058, %v1049
    %v1167 = vpack.c.b16 %v1059, %v1050
    %v1168 = vpack.c.b16 %v1060, %v1051
    %v1169 = vpack.c.b16 %v1061, %v1052
    %v1170 = vpack.c.b16 %v1062, %v1053
    %v1171 = vpack.c.b16 %v1063, %v1054
    %v1172 = vpack.c.b16 %v1064, %v1055
    %v1173 = vpack.c.b16 %v1065, %v1056
    %v1174 = vpack.c.b16 %v1066, %v1057
    %v1175 = vpack.c.b16 %v1076, %v1067
    %v1176 = vpack.c.b16 %v1077, %v1068
    %v1177 = vpack.c.b16 %v1078, %v1069
    %v1178 = vpack.c.b16 %v1079, %v1070
    %v1179 = vpack.c.b16 %v1080, %v1071
    %v1180 = vpack.c.b16 %v1081, %v1072
    %v1181 = vpack.c.b16 %v1082, %v1073
    %v1182 = vpack.c.b16 %v1083, %v1074
    %v1183 = vpack.c.b16 %v1084, %v1075
    %v1184 = vpack.c.b16 %v1094, %v1085
    %v1185 = vpack.c.b16 %v1095, %v1086
    %v1186 = vpack.c.b16 %v1096, %v1087
    %v1187 = vpack.c.b16 %v1097, %v1088
    %v1188 = vpack.c.b16 %v1098, %v1089
    %v1189 = vpack.c.b16 %v1099, %v1090
    %v1190 = vpack.c.b16 %v1100, %v1091
    %v1191 = vpack.c.b16 %v1101, %v1092
    %v1192 = vpack.c.b16 %v1102, %v1093
    %v1193 = vpack.c.b16 %v1112, %v1103
    %v1194 = vpack.c.b16 %v1113, %v1104
    %v1195 = vpack.c.b16 %v1114, %v1105
    %v1196 = vpack.c.b16 %v1115, %v1106
    %v1197 = vpack.c.b16 %v1116, %v1107
    %v1198 = vpack.c.b16 %v1117, %v1108
    %v1199 = vpack.c.b16 %v1118, %v1109
    %v1200 = vpack.c.b16 %v1119, %v1110
    %v1201 = vpack.c.b16 %v1120, %v1111
    %v1202 = vpack.c.b16 %v1130, %v1121
    %v1203 = vpack.c.b16 %v1131, %v1122
    %v1204 = vpack.c.b16 %v1132, %v1123
    %v1205 = vpack.c.b16 %v1133, %v1124
    %v1206 = vpack.c.b16 %v1134, %v1125
    %v1207 = vpack.c.b16 %v1135, %v1126
    %v1208 = vpack.c.b16 %v1136, %v1127
    %v1209 = vpack.c.b16 %v1137, %v1128
    %v1210 = vpack.c.b16 %v1138, %v1129
    %1283 = vmatprep.subr.bf16.mxu0 %v1203
    %1284 = vmatpush1.bf16.msra.mxu0 %v1202
    %1285 = vmatprep.subr.bf16.mxu0 %v1194
    %1286 = vmatpush1.bf16.msra.mxu0 %v1193
    %1287 = vmatprep.subr.bf16.mxu0 %v1185
    %1288 = vmatpush1.bf16.msra.mxu0 %v1184
    %1289 = vmatprep.subr.bf16.mxu0 %v1176
    %1290 = vmatpush1.bf16.msra.mxu0 %v1175
    %1291 = vmatprep.subr.bf16.mxu0 %v1167
    %1292 = vmatpush1.bf16.msra.mxu0 %v1166
    %1293 = vmatprep.subr.bf16.mxu0 %v1158
    %1294 = vmatpush1.bf16.msra.mxu0 %v1157
    %1295 = vmatprep.subr.bf16.mxu0 %v1149
    %1296 = vmatpush1.bf16.msra.mxu0 %v1148
    %1297 = vmatprep.subr.bf16.mxu0 %v1140
    %1298 = vmatpush1.bf16.msra.mxu0 %v1139
    %1299 = vmatprep.subr.bf16.mxu0 0
    %1300 = vmatpush2.bf16.msra.mxu0 0
    %1301 = vmatprep.subr.bf16.mxu0 0
    %1302 = vmatpush2.bf16.msra.mxu0 0
    %1303 = vmatprep.subr.bf16.mxu0 0
    %1304 = vmatpush2.bf16.msra.mxu0 0
    %1305 = vmatprep.subr.bf16.mxu0 0
    %1306 = vmatpush2.bf16.msra.mxu0 0
    %1307 = vmatprep.subr.bf16.mxu0 0
    %1308 = vmatpush2.bf16.msra.mxu0 0
    %1309 = vmatprep.subr.bf16.mxu0 0
    %1310 = vmatpush2.bf16.msra.mxu0 0
    %1311 = vmatprep.subr.bf16.mxu0 0
    %1312 = vmatpush2.bf16.msra.mxu0 0
    %1313 = vmatprep.subr.bf16.mxu0 0
    %1314 = vmatpush2.bf16.msra.mxu0 0
    %1315 = vmatprep.mubr.bf16.mxu0 0
    %1316 = vmatmul.mubr.bf16.gmra.mxu0 %v785
    %v1317 = vpop.f32.mrf.mxu0
    %v1318 = vadd.f32 %v873, %v1317
    %v1319 = vpop.f32.mrf.mxu0
    %v1320 = vadd.f32 %v877, %v1319
    %v1321 = vpop.f32.mrf.mxu0
    %v1322 = vpop.f32.mrf.mxu0
    %1323 = vdwg.mxu0
    %1324 = vmatprep.subr.bf16.mxu0 %v1205
    %1325 = vmatpush1.bf16.msra.mxu0 %v1204
    %1326 = vmatprep.subr.bf16.mxu0 %v1196
    %1327 = vmatpush1.bf16.msra.mxu0 %v1195
    %1328 = vmatprep.subr.bf16.mxu0 %v1187
    %1329 = vmatpush1.bf16.msra.mxu0 %v1186
    %1330 = vmatprep.subr.bf16.mxu0 %v1178
    %1331 = vmatpush1.bf16.msra.mxu0 %v1177
    %1332 = vmatprep.subr.bf16.mxu0 %v1169
    %1333 = vmatpush1.bf16.msra.mxu0 %v1168
    %1334 = vmatprep.subr.bf16.mxu0 %v1160
    %1335 = vmatpush1.bf16.msra.mxu0 %v1159
    %1336 = vmatprep.subr.bf16.mxu0 %v1151
    %1337 = vmatpush1.bf16.msra.mxu0 %v1150
    %1338 = vmatprep.subr.bf16.mxu0 %v1142
    %1339 = vmatpush1.bf16.msra.mxu0 %v1141
    %1340 = vmatprep.subr.bf16.mxu0 0
    %1341 = vmatpush2.bf16.msra.mxu0 0
    %1342 = vmatprep.subr.bf16.mxu0 0
    %1343 = vmatpush2.bf16.msra.mxu0 0
    %1344 = vmatprep.subr.bf16.mxu0 0
    %1345 = vmatpush2.bf16.msra.mxu0 0
    %1346 = vmatprep.subr.bf16.mxu0 0
    %1347 = vmatpush2.bf16.msra.mxu0 0
    %1348 = vmatprep.subr.bf16.mxu0 0
    %1349 = vmatpush2.bf16.msra.mxu0 0
    %1350 = vmatprep.subr.bf16.mxu0 0
    %1351 = vmatpush2.bf16.msra.mxu0 0
    %1352 = vmatprep.subr.bf16.mxu0 0
    %1353 = vmatpush2.bf16.msra.mxu0 0
    %1354 = vmatprep.subr.bf16.mxu0 0
    %1355 = vmatpush2.bf16.msra.mxu0 0
    %1356 = vmatprep.mubr.bf16.mxu0 0
    %1357 = vmatmul.mubr.bf16.gmra.mxu0 %v785
    %v1358 = vpop.f32.mrf.mxu0
    %v1359 = vadd.f32 %v881, %v1358
    %v1360 = vpop.f32.mrf.mxu0
    %v1361 = vadd.f32 %v885, %v1360
    %v1362 = vpop.f32.mrf.mxu0
    %v1363 = vpop.f32.mrf.mxu0
    %1364 = vdwg.mxu0
    %1365 = vmatprep.subr.bf16.mxu0 %v1207
    %1366 = vmatpush1.bf16.msra.mxu0 %v1206
    %1367 = vmatprep.subr.bf16.mxu0 %v1198
    %1368 = vmatpush1.bf16.msra.mxu0 %v1197
    %1369 = vmatprep.subr.bf16.mxu0 %v1189
    %1370 = vmatpush1.bf16.msra.mxu0 %v1188
    %1371 = vmatprep.subr.bf16.mxu0 %v1180
    %1372 = vmatpush1.bf16.msra.mxu0 %v1179
    %1373 = vmatprep.subr.bf16.mxu0 %v1171
    %1374 = vmatpush1.bf16.msra.mxu0 %v1170
    %1375 = vmatprep.subr.bf16.mxu0 %v1162
    %1376 = vmatpush1.bf16.msra.mxu0 %v1161
    %1377 = vmatprep.subr.bf16.mxu0 %v1153
    %1378 = vmatpush1.bf16.msra.mxu0 %v1152
    %1379 = vmatprep.subr.bf16.mxu0 %v1144
    %1380 = vmatpush1.bf16.msra.mxu0 %v1143
    %1381 = vmatprep.subr.bf16.mxu0 0
    %1382 = vmatpush2.bf16.msra.mxu0 0
    %1383 = vmatprep.subr.bf16.mxu0 0
    %1384 = vmatpush2.bf16.msra.mxu0 0
    %1385 = vmatprep.subr.bf16.mxu0 0
    %1386 = vmatpush2.bf16.msra.mxu0 0
    %1387 = vmatprep.subr.bf16.mxu0 0
    %1388 = vmatpush2.bf16.msra.mxu0 0
    %1389 = vmatprep.subr.bf16.mxu0 0
    %1390 = vmatpush2.bf16.msra.mxu0 0
    %1391 = vmatprep.subr.bf16.mxu0 0
    %1392 = vmatpush2.bf16.msra.mxu0 0
    %1393 = vmatprep.subr.bf16.mxu0 0
    %1394 = vmatpush2.bf16.msra.mxu0 0
    %1395 = vmatprep.subr.bf16.mxu0 0
    %1396 = vmatpush2.bf16.msra.mxu0 0
    %1397 = vmatprep.mubr.bf16.mxu0 0
    %1398 = vmatmul.mubr.bf16.gmra.mxu0 %v785
    %v1399 = vpop.f32.mrf.mxu0
    %v1400 = vadd.f32 %v889, %v1399
    %v1401 = vpop.f32.mrf.mxu0
    %v1402 = vadd.f32 %v893, %v1401
    %v1403 = vpop.f32.mrf.mxu0
    %v1404 = vpop.f32.mrf.mxu0
    %1405 = vdwg.mxu0
    %1406 = vmatprep.subr.bf16.mxu0 %v1209
    %1407 = vmatpush1.bf16.msra.mxu0 %v1208
    %1408 = vmatprep.subr.bf16.mxu0 %v1200
    %1409 = vmatpush1.bf16.msra.mxu0 %v1199
    %1410 = vmatprep.subr.bf16.mxu0 %v1191
    %1411 = vmatpush1.bf16.msra.mxu0 %v1190
    %1412 = vmatprep.subr.bf16.mxu0 %v1182
    %1413 = vmatpush1.bf16.msra.mxu0 %v1181
    %1414 = vmatprep.subr.bf16.mxu0 %v1173
    %1415 = vmatpush1.bf16.msra.mxu0 %v1172
    %1416 = vmatprep.subr.bf16.mxu0 %v1164
    %1417 = vmatpush1.bf16.msra.mxu0 %v1163
    %1418 = vmatprep.subr.bf16.mxu0 %v1155
    %1419 = vmatpush1.bf16.msra.mxu0 %v1154
    %1420 = vmatprep.subr.bf16.mxu0 %v1146
    %1421 = vmatpush1.bf16.msra.mxu0 %v1145
    %1422 = vmatprep.subr.bf16.mxu0 0
    %1423 = vmatpush2.bf16.msra.mxu0 0
    %1424 = vmatprep.subr.bf16.mxu0 0
    %1425 = vmatpush2.bf16.msra.mxu0 0
    %1426 = vmatprep.subr.bf16.mxu0 0
    %1427 = vmatpush2.bf16.msra.mxu0 0
    %1428 = vmatprep.subr.bf16.mxu0 0
    %1429 = vmatpush2.bf16.msra.mxu0 0
    %1430 = vmatprep.subr.bf16.mxu0 0
    %1431 = vmatpush2.bf16.msra.mxu0 0
    %1432 = vmatprep.subr.bf16.mxu0 0
    %1433 = vmatpush2.bf16.msra.mxu0 0
    %1434 = vmatprep.subr.bf16.mxu0 0
    %1435 = vmatpush2.bf16.msra.mxu0 0
    %1436 = vmatprep.subr.bf16.mxu0 0
    %1437 = vmatpush2.bf16.msra.mxu0 0
    %1438 = vmatprep.mubr.bf16.mxu0 0
    %1439 = vmatmul.mubr.bf16.gmra.mxu0 %v785
    %v1440 = vpop.f32.mrf.mxu0
    %v1441 = vadd.f32 %v897, %v1440
    %v1442 = vpop.f32.mrf.mxu0
    %v1443 = vadd.f32 %v901, %v1442
    %v1444 = vpop.f32.mrf.mxu0
    %v1445 = vpop.f32.mrf.mxu0
    %1446 = vdwg.mxu0
    %1447 = vmatprep.subr.bf16.mxu0 0
    %1448 = vmatpush1.bf16.msra.mxu0 %v1210
    %1449 = vmatprep.subr.bf16.mxu0 0
    %1450 = vmatpush1.bf16.msra.mxu0 %v1201
    %1451 = vmatprep.subr.bf16.mxu0 0
    %1452 = vmatpush1.bf16.msra.mxu0 %v1192
    %1453 = vmatprep.subr.bf16.mxu0 0
    %1454 = vmatpush1.bf16.msra.mxu0 %v1183
    %1455 = vmatprep.subr.bf16.mxu0 0
    %1456 = vmatpush1.bf16.msra.mxu0 %v1174
    %1457 = vmatprep.subr.bf16.mxu0 0
    %1458 = vmatpush1.bf16.msra.mxu0 %v1165
    %1459 = vmatprep.subr.bf16.mxu0 0
    %1460 = vmatpush1.bf16.msra.mxu0 %v1156
    %1461 = vmatprep.subr.bf16.mxu0 0
    %1462 = vmatpush1.bf16.msra.mxu0 %v1147
    %1463 = vmatprep.subr.bf16.mxu0 0
    %1464 = vmatpush2.bf16.msra.mxu0 0
    %1465 = vmatprep.subr.bf16.mxu0 0
    %1466 = vmatpush2.bf16.msra.mxu0 0
    %1467 = vmatprep.subr.bf16.mxu0 0
    %1468 = vmatpush2.bf16.msra.mxu0 0
    %1469 = vmatprep.subr.bf16.mxu0 0
    %1470 = vmatpush2.bf16.msra.mxu0 0
    %1471 = vmatprep.subr.bf16.mxu0 0
    %1472 = vmatpush2.bf16.msra.mxu0 0
    %1473 = vmatprep.subr.bf16.mxu0 0
    %1474 = vmatpush2.bf16.msra.mxu0 0
    %1475 = vmatprep.subr.bf16.mxu0 0
    %1476 = vmatpush2.bf16.msra.mxu0 0
    %1477 = vmatprep.subr.bf16.mxu0 0
    %1478 = vmatpush2.bf16.msra.mxu0 0
    %1479 = vmatprep.mubr.bf16.mxu0 0
    %1480 = vmatmul.mubr.bf16.gmra.mxu0 %v785
    %v1481 = vpop.f32.mrf.mxu0
    %v1482 = vadd.f32 %v905, %v1481
    %v1483 = vpop.f32.mrf.mxu0
    %v1484 = vpop.f32.mrf.mxu0
    %v1485 = vpop.f32.mrf.mxu0
    %1486 = vdwg.mxu0
    %v1487 = vtanh.pop %v1320
    %v1488 = vtanh.pop %v1359
    %v1489 = vtanh.pop %v1361
    %v1490 = vtanh.pop %v1400
    %v1491 = vtanh.pop %v1402
    %v1492 = vtanh.pop %v1441
    %v1493 = vtanh.pop %v1443
    %v1494 = vtanh.pop %v1482
    %v1495 = vlaneseq
    %v1496 = vand.u32 %v1495, 127
    %vm1497 = vcmp.lt.s32.totalorder %v1496, 10
    %v1498 = vsel %vm1497, %v1318, -inf
    %1499 = vmax.xlane.f32.xlu0 %v1498
    %v1500 = vpop.xlane.xlu0 %1499
    %v1501 = vsub.f32 %v1498, %v1500
    %v1502 = vmul.f32 %v1501, 1.442695
    %v1503 = vpow.pop %v1502
    %v1504 = vsel %vm1497, %v1503, 0.0
    %1505 = vadd.xlane.f32.xlu0 %v1504
    %v1506 = vpop.xlane.xlu0 %1505
    %v1507 = vrcp.pop %v1506
    %v1508 = vmul.f32 %v1504, %v1507
    %1509 = vst [vmem:[#allocation10] sm:$0xff] %v784
    %1510 = vst [vmem:[#allocation10 + $0x8] sm:$0xff] %v1318
    %1511 = vst [vmem:[#allocation10 + $0x10] sm:$0xff] %v1487
    %1512 = vst [vmem:[#allocation10 + $0x18] sm:$0xff] %v1488
    %1513 = vst [vmem:[#allocation10 + $0x20] sm:$0xff] %v1489
    %1514 = vst [vmem:[#allocation10 + $0x28] sm:$0xff] %v1490
    %1515 = vst [vmem:[#allocation10 + $0x30] sm:$0xff] %v1491
    %1516 = vst [vmem:[#allocation10 + $0x38] sm:$0xff] %v1492
    %1517 = vst [vmem:[#allocation10 + $0x40] sm:$0xff] %v1493
    %1518 = vst [vmem:[#allocation10 + $0x48] sm:$0xff] %v1494
    %1519 = vst [vmem:[#allocation10 + $0x50] sm:$0xff] %v1508
    // Predicated region
    $region38: #{tpu_custom_call.1} parent=1 // pred_check
      _
    $region39: #{tpu_custom_call.1} parent=1 // pred_check_branch
      %1521 = sbr.rel (0) target = $region41
    $region40: #{tpu_custom_call.1} parent=1 // pred_region
      %s1523 = ssub.s32 1408, 1408
      %1524 = vsyncadd [#allocation4], %s1523
      %s1526 = sshll.u32 [#allocation10], 4
      %s1527 = int_to_ptr.vmem [resolvable:$true] %s1526
      %1529 = dma.vmem_to_hbm [thread:$0]  %s1527, 1408, %s5, [#allocation4]
    $region41: #{tpu_custom_call.1} parent=1 // pred_fallthru
      _
    // Predicated region
    $region42: #{tpu_custom_call.1} parent=1 // pred_check
      _
    $region43: #{tpu_custom_call.1} parent=1 // pred_check_branch
      %1531 = sbr.rel (0) target = $region45
    $region44: #{tpu_custom_call.1} parent=1 // pred_region
      %1532 = dma.done [#allocation4], 1408
    $region45: #{tpu_custom_call.1} parent=1 // pred_fallthru
      _
    %1533 = vsyncpa [#allocation3], 1
    %1534 = vsyncpa [#allocation6], 1
    %1535 = vsyncpa [#allocation9], 1
    %1536 = vsyncpa [#allocation4], 1

</llo_original>
